<compile_context>
chip_gen: v7x
topology: tpu7x:2x2x1
jax: 0.10.0
libtpu: 0.0.40
codegen_flags: <defaults>
</compile_context>

<pallas_src>
import functools

import numpy as np

import jax
import jax.numpy as jnp
from jax.experimental import pallas as pl
from jax.experimental.pallas import tpu as pltpu


def _round_up(a, m):
    return (a + m - 1) // m * m


def _mmd_tile_kernel(ti_ref, tj_ref, w_ref,          # scalar-prefetch (SMEM)
                     rows_ref, cols_ref, sqr_ref, sqc_ref,
                     out_ref, *, kernel_mul, kernel_num):
    s = pl.program_id(0)

    # Gram tile on the MXU, contracting the feature axis directly (no
    # transpose/relayout), f32 accumulation (bf16 slabs -> bf16 MXU path).
    gram = jax.lax.dot_general(
        rows_ref[...], cols_ref[...],
        dimension_numbers=(((1,), (1,)), ((), ())),
        preferred_element_type=jnp.float32)                      # (T, T) f32

    # Squared distances already divided by the base bandwidth (the wrapper
    # pre-scaled the data by rsqrt(bandwidth)).  Norms are precomputed f32;
    # padded rows carry a huge norm so exp() underflows to exactly 0.
    l2 = jnp.maximum(sqr_ref[...] + sqc_ref[...] - 2.0 * gram, 0.0)

    # Multi-scale Gaussian kernel sum.  kernel_mul == 2: one EUP exp of the
    # widest bandwidth, then walk the ladder with cheap VPU squarings:
    #   exp(-l2 / 2^(k-1)) = exp(-l2 / 2^k)^2.
    if float(kernel_mul) == 2.0:
        c = -(1.0 / (2.0 ** (kernel_num - 1)))
        e = jnp.exp(l2 * c)
        ksum = e
        for _ in range(kernel_num - 1):
            e = e * e
            ksum = ksum + e
    else:
        ksum = jnp.zeros_like(l2)
        for k in range(kernel_num):
            ksum = ksum + jnp.exp(l2 * (-(1.0 / (float(kernel_mul) ** k))))

    # Per-step signed weight: +-1 on diagonal tiles, +-2 off-diagonal (to
    # account for the skipped symmetric tile); sign encodes same-/cross-domain.
    w = w_ref[s].astype(jnp.float32)
    partial = w * jnp.sum(ksum)

    # Lane-dense (8, 128) partial block: value at [0, 0], zeros elsewhere.
    r8 = jax.lax.broadcasted_iota(jnp.int32, (8, 128), 0)
    c128 = jax.lax.broadcasted_iota(jnp.int32, (8, 128), 1)
    out_ref[...] = jnp.where((r8 == 0) & (c128 == 0), partial, 0.0)


def mmd_loss(source, target, kernel_mul=2.0, kernel_num=5, *,
             compute_dtype=jnp.bfloat16, tile=512):
    """Pallas implementation of MMD_loss.forward (fix_sigma=None path)."""
    assert source.ndim == 2 and source.shape == target.shape
    batch, d = source.shape
    n_total = 2 * batch

    total = jnp.concatenate([source, target], axis=0).astype(jnp.float32)

    # Center by the column mean: pairwise distances are translation-invariant
    # and the analytic bandwidth identity below is cancellation-prone on
    # offset data.
    total = total - jnp.mean(total, axis=0, keepdims=True)

    # Analytic sum of all pairwise squared distances (no NxN materialization):
    #   sum_ij ||x_i - x_j||^2 = 2*N*sum_i ||x_i||^2 - 2*||sum_i x_i||^2
    sq0 = jnp.sum(total * total, axis=1)
    colsum = jnp.sum(total, axis=0)
    sum_l2 = 2.0 * n_total * jnp.sum(sq0) - 2.0 * jnp.sum(colsum * colsum)
    bandwidth = sum_l2 / float(n_total * n_total - n_total)
    bandwidth = bandwidth / (float(kernel_mul) ** (kernel_num // 2))
    # NOTE: bandwidth == 0 (all samples identical) gives inf/NaN, exactly like
    # the PyTorch module (no guard, to preserve semantics).

    # Pre-scale so per-scale bandwidth factors are compile-time constants in
    # the kernel (fuses with the pad/cast below; no extra HBM pass).
    total_s = total * jax.lax.rsqrt(bandwidth)

    # ---- Tiling ------------------------------------------------------------
    d_pad = _round_up(d, 128)
    itemsize = jnp.dtype(compute_dtype).itemsize

    t = int(tile)
    assert t % 128 == 0 and t >= 128, "tile must be a multiple of 128"
    t = min(t, _round_up(batch, 128))          # don't over-tile tiny inputs

    def _footprint(tt):                         # double-buffered slabs + temps
        return 2 * 2 * tt * d_pad * itemsize + 4 * tt * tt * 4

    while t > 128 and _footprint(t) > (12 << 20):
        t = max(128, _round_up(t // 2, 128))

    # Pad source and target SEPARATELY to a multiple of t: the source/target
    # boundary is then tile-aligned, so every tile has a constant sign.
    half_pad = _round_up(batch, t)
    n_pad = 2 * half_pad
    gh = half_pad // t          # row tiles per half (>= 1, so gm >= 2)
    gm = 2 * gh

    src_p = jnp.pad(total_s[:batch], ((0, half_pad - batch), (0, d_pad - d)))
    tgt_p = jnp.pad(total_s[batch:], ((0, half_pad - batch), (0, d_pad - d)))
    data_f32 = jnp.concatenate([src_p, tgt_p], axis=0)        # (n_pad, d_pad)

    # f32 row norms, precomputed once.  Padded rows get a huge norm so their
    # kernel values underflow to exactly 0 (no validity mask in the kernel).
    sq = jnp.sum(data_f32 * data_f32, axis=1)
    valid = (jnp.arange(n_pad) % half_pad) < batch
    sq = jnp.where(valid, sq, jnp.float32(1e30))
    sq_row = sq.reshape(n_pad, 1)
    sq_col = sq.reshape(1, n_pad)

    data = data_f32.astype(compute_dtype)

    # ---- Upper-triangle schedule (scalar prefetch) --------------------------
    steps = [(i, j) for i in range(gm) for j in range(i, gm)]
    n_steps = len(steps)
    tile_i = jnp.asarray(np.array([i for i, _ in steps], np.int32))
    tile_j = jnp.asarray(np.array([j for _, j in steps], np.int32))
    # weight = (2 if off-diagonal else 1) * (+1 same-domain, -1 cross-domain)
    weight = jnp.asarray(np.array(
        [(1 if i == j else 2) * (1 if (i < gh) == (j < gh) else -1)
         for (i, j) in steps], np.int32))

    kernel = functools.partial(
        _mmd_tile_kernel,
        kernel_mul=float(kernel_mul), kernel_num=int(kernel_num))

    n_exp = 1 if float(kernel_mul) == 2.0 else int(kernel_num)
    cost = pl.CostEstimate(
        flops=int(2 * n_steps * t * t * d_pad),
        transcendentals=int(n_steps * t * t * n_exp),
        bytes_accessed=int(n_steps * (2 * t * d_pad * itemsize + 2 * t * 4
                                      + 8 * 128 * 4)))

    partials = pl.pallas_call(
        kernel,
        out_shape=jax.ShapeDtypeStruct((n_steps * 8, 128), jnp.float32),
        grid_spec=pltpu.PrefetchScalarGridSpec(
            num_scalar_prefetch=3,
            grid=(n_steps,),
            in_specs=[
                pl.BlockSpec((t, d_pad), lambda s, ti, tj, w: (ti[s], 0)),  # rows
                pl.BlockSpec((t, d_pad), lambda s, ti, tj, w: (tj[s], 0)),  # cols
                pl.BlockSpec((t, 1),     lambda s, ti, tj, w: (ti[s], 0)),  # row norms
                pl.BlockSpec((1, t),     lambda s, ti, tj, w: (0, tj[s])),  # col norms
            ],
            out_specs=pl.BlockSpec((8, 128), lambda s, ti, tj, w: (s, 0)),
        ),
        compiler_params=pltpu.CompilerParams(
            dimension_semantics=("parallel",),
            vmem_limit_bytes=32 * 1024 * 1024),
        cost_estimate=cost,
    )(tile_i, tile_j, weight, data, data, sq_row, sq_col)

    return jnp.sum(partials) / float(batch * batch)


def _mmd_loss_ref(source, target, kernel_mul=2.0, kernel_num=5):
    """Pure-JAX reference mirroring the PyTorch module exactly."""
    total = jnp.concatenate([source, target], axis=0).astype(jnp.float32)
    n = total.shape[0]
    diff = total[None, :, :] - total[:, None, :]
    l2 = jnp.sum(diff * diff, axis=2)
    bandwidth = jnp.sum(l2) / (n * n - n)
    bandwidth = bandwidth / (kernel_mul ** (kernel_num // 2))
    kernels = sum(jnp.exp(-l2 / (bandwidth * kernel_mul ** i))
                  for i in range(kernel_num))
    b = source.shape[0]
    return jnp.mean(kernels[:b, :b] + kernels[b:, b:]
                    - kernels[:b, b:] - kernels[b:, :b])


if __name__ == "__main__":
    key = jax.random.PRNGKey(0)
    k1, k2, k3, k4 = jax.random.split(key, 4)

    # Shapes consistent with the module: (batch, features) embeddings.
    batch, features = 8, 32
    source = jax.random.normal(k1, (batch, features), dtype=jnp.float32)
    target = jax.random.normal(k2, (batch, features), dtype=jnp.float32) + 1.0
    ref = _mmd_loss_ref(source, target)

    # 1) f32 path: exact parity with the PyTorch module.
    loss_f32 = mmd_loss(source, target, compute_dtype=jnp.float32)
    jax.block_until_ready(loss_f32)
    assert jnp.allclose(loss_f32, ref, rtol=5e-4, atol=1e-5), (loss_f32, ref)

    # 2) Default bf16-slab MXU fast path (f32 norms + f32 accumulation).
    loss_bf16 = mmd_loss(source, target)
    jax.block_until_ready(loss_bf16)
    assert jnp.allclose(loss_bf16, ref, rtol=1e-1, atol=1e-2), (loss_bf16, ref)

    # 3) Multi-tile path: small tile -> 4x4 tile grid (10 triangle steps),
    #    row padding (130 -> 256 per half), cross-domain and weight-2 tiles.
    b2, f2 = 130, 33
    src2 = jax.random.normal(k3, (b2, f2), dtype=jnp.float32)
    tgt2 = jax.random.normal(k4, (b2, f2), dtype=jnp.float32) + 0.5
    loss2 = mmd_loss(src2, tgt2, compute_dtype=jnp.float32, tile=128)
    jax.block_until_ready(loss2)
    ref2 = _mmd_loss_ref(src2, tgt2)
    assert jnp.allclose(loss2, ref2, rtol=5e-4, atol=1e-5), (loss2, ref2)

    # 4) Non-power-of-two kernel_mul exercises the generic exp loop.
    loss3 = mmd_loss(source, target, kernel_mul=3.0, compute_dtype=jnp.float32)
    jax.block_until_ready(loss3)
    ref3 = _mmd_loss_ref(source, target, kernel_mul=3.0)
    assert jnp.allclose(loss3, ref3, rtol=5e-4, atol=1e-5), (loss3, ref3)

    print("KERNEL_OK")
</pallas_src>

<mosaic_0001>
module attributes {stable_mosaic.version = 11 : i64} {
  func.func @_mmd_tile_kernel(%arg0: i32, %arg1: memref<3xi32, #tpu.memory_space<smem>>, %arg2: memref<3xi32, #tpu.memory_space<smem>>, %arg3: memref<3xi32, #tpu.memory_space<smem>>, %arg4: memref<128x128xf32, #tpu.memory_space<vmem>>, %arg5: memref<128x128xf32, #tpu.memory_space<vmem>>, %arg6: memref<128x1xf32, #tpu.memory_space<vmem>>, %arg7: memref<1x128xf32, #tpu.memory_space<vmem>>, %arg8: memref<8x128xf32, #tpu.memory_space<vmem>>) attributes {dimension_semantics = [#tpu.dimension_semantics<parallel>], iteration_bounds = array<i64: 3>, scalar_prefetch = 3 : i64, scratch_operands = 0 : i64, tpu.core_type = #tpu.core_type<tc>, window_params = [{transform_indices = @transform_0, window_bounds = array<i64: 128, 128>}, {transform_indices = @transform_1, window_bounds = array<i64: 128, 128>}, {transform_indices = @transform_2, window_bounds = array<i64: 128, 1>}, {transform_indices = @transform_3, window_bounds = array<i64: 1, 128>}, {transform_indices = @transform_4, window_bounds = array<i64: 8, 128>}]} {
    %c0 = arith.constant 0 : index
    %c0_0 = arith.constant 0 : index
    %0 = vector.load %arg4[%c0, %c0_0] : memref<128x128xf32, #tpu.memory_space<vmem>>, vector<128x128xf32>
    %c0_1 = arith.constant 0 : index
    %c0_2 = arith.constant 0 : index
    %1 = vector.load %arg5[%c0_1, %c0_2] : memref<128x128xf32, #tpu.memory_space<vmem>>, vector<128x128xf32>
    %cst = arith.constant dense<0.000000e+00> : vector<128x128xf32>
    %2 = tpu.matmul %0, %1, %cst {dimension_numbers = #tpu.dot_dimension_numbers<[1], [1], [0], [0], [0, 0, 1, 0], [], []>} : vector<128x128xf32>, vector<128x128xf32>, vector<128x128xf32> -> vector<128x128xf32>
    %c0_3 = arith.constant 0 : index
    %c0_4 = arith.constant 0 : index
    %3 = vector.load %arg6[%c0_3, %c0_4] : memref<128x1xf32, #tpu.memory_space<vmem>>, vector<128x1xf32>
    %c0_5 = arith.constant 0 : index
    %c0_6 = arith.constant 0 : index
    %4 = vector.load %arg7[%c0_5, %c0_6] : memref<1x128xf32, #tpu.memory_space<vmem>>, vector<1x128xf32>
    %5 = vector.broadcast %3 : vector<128x1xf32> to vector<128x128xf32>
    %6 = vector.broadcast %4 : vector<1x128xf32> to vector<128x128xf32>
    %7 = arith.addf %5, %6 : vector<128x128xf32>
    %cst_7 = arith.constant 2.000000e+00 : f32
    %8 = vector.broadcast %cst_7 : f32 to vector<128x128xf32>
    %9 = arith.mulf %8, %2 : vector<128x128xf32>
    %10 = arith.subf %7, %9 : vector<128x128xf32>
    %cst_8 = arith.constant 0.000000e+00 : f32
    %11 = vector.broadcast %cst_8 : f32 to vector<128x128xf32>
    %12 = arith.maximumf %10, %11 : vector<128x128xf32>
    %cst_9 = arith.constant -6.250000e-02 : f32
    %13 = vector.broadcast %cst_9 : f32 to vector<128x128xf32>
    %14 = arith.mulf %12, %13 : vector<128x128xf32>
    %15 = math.exp %14 : vector<128x128xf32>
    %16 = arith.mulf %15, %15 : vector<128x128xf32>
    %17 = arith.addf %15, %16 : vector<128x128xf32>
    %18 = arith.mulf %16, %16 : vector<128x128xf32>
    %19 = arith.addf %17, %18 : vector<128x128xf32>
    %20 = arith.mulf %18, %18 : vector<128x128xf32>
    %21 = arith.addf %19, %20 : vector<128x128xf32>
    %22 = arith.mulf %20, %20 : vector<128x128xf32>
    %23 = arith.addf %21, %22 : vector<128x128xf32>
    %24 = arith.index_cast %arg0 : i32 to index
    %25 = memref.load %arg3[%24] : memref<3xi32, #tpu.memory_space<smem>>
    %26 = arith.sitofp %25 : i32 to f32
    %27 = vector.shape_cast %23 : vector<128x128xf32> to vector<1x128x128xf32>
    %cst_10 = arith.constant dense<0.000000e+00> : vector<1xf32>
    %28 = vector.multi_reduction <add>, %27, %cst_10 [1, 2] : vector<1x128x128xf32> to vector<1xf32>
    %29 = vector.shape_cast %28 : vector<1xf32> to vector<1x1x1xf32>
    %30 = vector.extract %29[0, 0, 0] : f32 from vector<1x1x1xf32>
    %31 = arith.mulf %26, %30 : f32
    %32 = tpu.iota {dimensions = array<i32: 0>} : vector<8x128xi32>
    %33 = tpu.iota {dimensions = array<i32: 1>} : vector<8x128xi32>
    %c0_i32 = arith.constant 0 : i32
    %34 = vector.broadcast %c0_i32 : i32 to vector<8x128xi32>
    %35 = arith.cmpi eq, %32, %34 : vector<8x128xi32>
    %c0_i32_11 = arith.constant 0 : i32
    %36 = vector.broadcast %c0_i32_11 : i32 to vector<8x128xi32>
    %37 = arith.cmpi eq, %33, %36 : vector<8x128xi32>
    %38 = arith.andi %35, %37 : vector<8x128xi1>
    %cst_12 = arith.constant 0.000000e+00 : f32
    %39 = vector.broadcast %31 : f32 to vector<8x128xf32>
    %40 = vector.broadcast %cst_12 : f32 to vector<8x128xf32>
    %41 = arith.select %38, %39, %40 : vector<8x128xi1>, vector<8x128xf32>
    %c0_13 = arith.constant 0 : index
    %c0_14 = arith.constant 0 : index
    %42 = vector.load %arg8[%c0_13, %c0_14] : memref<8x128xf32, #tpu.memory_space<vmem>>, vector<8x128xf32>
    tpu.vector_store %arg8[%c0_13, %c0_14], %41 {strides = array<i32>} : memref<8x128xf32, #tpu.memory_space<vmem>>, vector<8x128xf32>,
    return
  }
  func.func @transform_0(%arg0: i32, %arg1: memref<3xi32, #tpu.memory_space<smem>>, %arg2: memref<3xi32, #tpu.memory_space<smem>>, %arg3: memref<3xi32, #tpu.memory_space<smem>>) -> (i32, i32) {
    %0 = arith.index_cast %arg0 : i32 to index
    %1 = memref.load %arg1[%0] : memref<3xi32, #tpu.memory_space<smem>>
    %c0_i32 = arith.constant 0 : i32
    %c0_i32_0 = arith.constant 0 : i32
    return %1, %c0_i32 : i32, i32
  }
  func.func @transform_1(%arg0: i32, %arg1: memref<3xi32, #tpu.memory_space<smem>>, %arg2: memref<3xi32, #tpu.memory_space<smem>>, %arg3: memref<3xi32, #tpu.memory_space<smem>>) -> (i32, i32) {
    %0 = arith.index_cast %arg0 : i32 to index
    %1 = memref.load %arg2[%0] : memref<3xi32, #tpu.memory_space<smem>>
    %c0_i32 = arith.constant 0 : i32
    %c0_i32_0 = arith.constant 0 : i32
    return %1, %c0_i32 : i32, i32
  }
  func.func @transform_2(%arg0: i32, %arg1: memref<3xi32, #tpu.memory_space<smem>>, %arg2: memref<3xi32, #tpu.memory_space<smem>>, %arg3: memref<3xi32, #tpu.memory_space<smem>>) -> (i32, i32) {
    %0 = arith.index_cast %arg0 : i32 to index
    %1 = memref.load %arg1[%0] : memref<3xi32, #tpu.memory_space<smem>>
    %c0_i32 = arith.constant 0 : i32
    %c0_i32_0 = arith.constant 0 : i32
    return %1, %c0_i32 : i32, i32
  }
  func.func @transform_3(%arg0: i32, %arg1: memref<3xi32, #tpu.memory_space<smem>>, %arg2: memref<3xi32, #tpu.memory_space<smem>>, %arg3: memref<3xi32, #tpu.memory_space<smem>>) -> (i32, i32) {
    %0 = arith.index_cast %arg0 : i32 to index
    %1 = memref.load %arg2[%0] : memref<3xi32, #tpu.memory_space<smem>>
    %c0_i32 = arith.constant 0 : i32
    %c0_i32_0 = arith.constant 0 : i32
    return %c0_i32, %1 : i32, i32
  }
  func.func @transform_4(%arg0: i32, %arg1: memref<3xi32, #tpu.memory_space<smem>>, %arg2: memref<3xi32, #tpu.memory_space<smem>>, %arg3: memref<3xi32, #tpu.memory_space<smem>>) -> (i32, i32) {
    %c0_i32 = arith.constant 0 : i32
    %c0_i32_0 = arith.constant 0 : i32
    return %arg0, %c0_i32 : i32, i32
  }
}

</mosaic_0001>

<llo_original>
// kernel: tpu_custom_call.1
$region0: #{tpu_custom_call.1}
  #allocation0 [shape = 'u32[]', space=smem, size = 0x4, offset = 0x4, fixed_abs, tag = 'smem constant byte address 0x4 - core index']
  #allocation1 [shape = 'u32[144,128]{1,0:T(1,128)}', space=vmem, size = 0x12000, scoped, tag = 'internal scratch']
  #allocation2 [shape = 's32[1]{0}', space=sflag, size = 0x4, scoped, tag = 'scoped memory for tpu_custom_call.1']
  #allocation3 [shape = 'u8[512]{0}', space=smem, size = 0x200, scoped, tag = 'prefetched SMEM operand 0']
  #allocation4 [shape = 'u8[512]{0}', space=smem, size = 0x200, scoped, tag = 'prefetched SMEM operand 1']
  #allocation5 [shape = 'u8[512]{0}', space=smem, size = 0x200, scoped, tag = 'prefetched SMEM operand 2']
  %s0 = inlined_call_operand.vmem [shape: s32[3], index: 0, kind: input, shape index: {}]
  %s1 = inlined_call_operand.vmem [shape: s32[3], index: 1, kind: input, shape index: {}]
  %s2 = inlined_call_operand.vmem [shape: s32[3], index: 2, kind: input, shape index: {}]
  %s3 = inlined_call_operand.vmem [shape: f32[256,128], index: 3, kind: input, shape index: {}]
  %s4 = inlined_call_operand.hbm [shape: f32[256,128], index: 4, kind: input, shape index: {}]
  %s5 = inlined_call_operand.vmem [shape: f32[256,1], index: 5, kind: input, shape index: {}]
  %s6 = inlined_call_operand.vmem [shape: f32[1,256], index: 6, kind: input, shape index: {}]
  %s7 = inlined_call_operand.hbm [shape: f32[24,128], index: 7, kind: output, shape index: {}]
  %s8 = sld [smem:[#allocation0]]
  $region53: #{tpu_custom_call.1} parent=0
    _
  %s10 = ssub.s32 1, %s8
  %s11 = scalar_select 0, %s10, %s8
  %s12 = sshll.u32 %s0, 4
  %s13 = int_to_ptr.vmem [resolvable:$true] %s12
  %15 = dma.vmem_to_smem %s13, 16, [#allocation3], [#allocation2]
  %s16 = sshll.u32 %s1, 4
  %s17 = int_to_ptr.vmem [resolvable:$true] %s16
  %19 = dma.vmem_to_smem %s17, 16, [#allocation4], [#allocation2]
  %s20 = sshll.u32 %s2, 4
  %s21 = int_to_ptr.vmem [resolvable:$true] %s20
  %23 = dma.vmem_to_smem %s21, 16, [#allocation5], [#allocation2]
  %24 = dma.done [#allocation2], 48
  %25 = sfence
  $region1: #{tpu_custom_call.1} parent=0
    #allocation6 [shape = 'u8[131072]{0}', space=vmem, size = 0x20000, scoped, tag = 'input window, operand 4']
    #allocation7 [shape = 's32[2]{0}', space=sflag, size = 0x8, scoped, tag = 'scoped memory for tpu_custom_call.1']
    #allocation8 [shape = 's32[2]{0}', space=sflag, size = 0x8, scoped, tag = 'scoped memory for tpu_custom_call.1']
    #allocation9 [shape = 'u8[8192]{0}', space=vmem, size = 0x2000, scoped, tag = 'output window, operand 0']
    %26 = vsyncpa [#allocation7], 0
    %s27 = scalar_lea.sflag [#allocation7], 1
    %28 = vsyncpa %s27, 0
    %29 = vsyncpa [#allocation8], 0
    %s30 = scalar_lea.sflag [#allocation8], 1
    %31 = vsyncpa %s30, 0
    loop: start=0, step=1, limit=5
    $region2: #{tpu_custom_call.1} parent=1 // loop_pre_header
      _
    $region3: #{tpu_custom_call.1} parent=1 // loop_header
      %s33 = sphi 0, %s37
      %p34 = scmp.ge.s32.totalorder %s33, 5
      %s45 = sphi 0, %s47
      %s48 = sphi 0, %s45
      %s49 = sphi 0, %s48
      %s65 = sphi 0, %s49
      %s73 = sphi 0, %s75
      %s76 = sphi 0, %s73
      %s77 = sphi 0, %s76
      %s93 = sphi 0, %s77
      %s101 = sphi 0, %s103
      %s104 = sphi 0, %s101
      %s105 = sphi 0, %s104
      %s121 = sphi 0, %s105
      %s129 = sphi 0, %s131
      %s132 = sphi 0, %s129
      %s133 = sphi 0, %s132
      %s149 = sphi 0, %s133
      %s155 = sphi 0, %s157
      %s158 = sphi 0, %s155
      %s159 = sphi 0, %s158
      %s175 = sphi 0, %s159
    $region4: #{tpu_custom_call.1} parent=1 // loop_header_branch
      %36 = sbr.rel (%p34) target = $region8
    $region5: #{tpu_custom_call.1} parent=1 // loop_body
      %s38 = ssub.s32 %s33, 1
      %s39 = ssub.s32 %s33, 2
      %s40 = sadd.s32 %s33, 1
      %s41 = sld [smem:[#allocation3 + %s33]]
      %s42 = sld [smem:[#allocation3 + %s40]]
      %s43 = ssub.s32 %s41, %s42
      %p44 = scmp.eq.s32.totalorder %s43, 0
      %s46 = sadd.s32 %s45, 1
      %s47 = scalar_select %p44, %s45, %s46
      %p50 = pneg %p44
      %p51 = scmp.eq.s32.totalorder %s33, 2
      %p52 = por %p50, %p51
      %p53 = scmp.ne.s32.totalorder %s45, %s48
      %p54 = scmp.eq.s32.totalorder %s33, 0
      %p55 = por %p53, %p54
      %p56 = scmp.ne.s32.totalorder %s45, %s48
      %p57 = scmp.eq.s32.totalorder %s38, 2
      %p58 = por %p56, %p57
      %p59 = scmp.ne.s32.totalorder %s48, %s49
      %p60 = scmp.eq.s32.totalorder %s38, 0
      %p61 = por %p59, %p60
      %p62 = scmp.ne.s32.totalorder %s48, %s49
      %p63 = scmp.eq.s32.totalorder %s39, 2
      %p64 = por %p62, %p63
      %p66 = scmp.ne.s32.totalorder %s49, %s65
      %p67 = scmp.eq.s32.totalorder %s39, 0
      %p68 = por %p66, %p67
      %s69 = sld [smem:[#allocation4 + %s33]]
      %s70 = sld [smem:[#allocation4 + %s40]]
      %s71 = ssub.s32 %s69, %s70
      %p72 = scmp.eq.s32.totalorder %s71, 0
      %s74 = sadd.s32 %s73, 1
      %s75 = scalar_select %p72, %s73, %s74
      %p78 = pneg %p72
      %p79 = scmp.eq.s32.totalorder %s33, 2
      %p80 = por %p78, %p79
      %p81 = scmp.ne.s32.totalorder %s73, %s76
      %p82 = scmp.eq.s32.totalorder %s33, 0
      %p83 = por %p81, %p82
      %p84 = scmp.ne.s32.totalorder %s73, %s76
      %p85 = scmp.eq.s32.totalorder %s38, 2
      %p86 = por %p84, %p85
      %p87 = scmp.ne.s32.totalorder %s76, %s77
      %p88 = scmp.eq.s32.totalorder %s38, 0
      %p89 = por %p87, %p88
      %p90 = scmp.ne.s32.totalorder %s76, %s77
      %p91 = scmp.eq.s32.totalorder %s39, 2
      %p92 = por %p90, %p91
      %p94 = scmp.ne.s32.totalorder %s77, %s93
      %p95 = scmp.eq.s32.totalorder %s39, 0
      %p96 = por %p94, %p95
      %s97 = sld [smem:[#allocation3 + %s33]]
      %s98 = sld [smem:[#allocation3 + %s40]]
      %s99 = ssub.s32 %s97, %s98
      %p100 = scmp.eq.s32.totalorder %s99, 0
      %s102 = sadd.s32 %s101, 1
      %s103 = scalar_select %p100, %s101, %s102
      %p106 = pneg %p100
      %p107 = scmp.eq.s32.totalorder %s33, 2
      %p108 = por %p106, %p107
      %p109 = scmp.ne.s32.totalorder %s101, %s104
      %p110 = scmp.eq.s32.totalorder %s33, 0
      %p111 = por %p109, %p110
      %p112 = scmp.ne.s32.totalorder %s101, %s104
      %p113 = scmp.eq.s32.totalorder %s38, 2
      %p114 = por %p112, %p113
      %p115 = scmp.ne.s32.totalorder %s104, %s105
      %p116 = scmp.eq.s32.totalorder %s38, 0
      %p117 = por %p115, %p116
      %p118 = scmp.ne.s32.totalorder %s104, %s105
      %p119 = scmp.eq.s32.totalorder %s39, 2
      %p120 = por %p118, %p119
      %p122 = scmp.ne.s32.totalorder %s105, %s121
      %p123 = scmp.eq.s32.totalorder %s39, 0
      %p124 = por %p122, %p123
      %s125 = sld [smem:[#allocation4 + %s33]]
      %s126 = sld [smem:[#allocation4 + %s40]]
      %s127 = ssub.s32 %s125, %s126
      %p128 = scmp.eq.s32.totalorder %s127, 0
      %s130 = sadd.s32 %s129, 1
      %s131 = scalar_select %p128, %s129, %s130
      %p134 = pneg %p128
      %p135 = scmp.eq.s32.totalorder %s33, 2
      %p136 = por %p134, %p135
      %p137 = scmp.ne.s32.totalorder %s129, %s132
      %p138 = scmp.eq.s32.totalorder %s33, 0
      %p139 = por %p137, %p138
      %p140 = scmp.ne.s32.totalorder %s129, %s132
      %p141 = scmp.eq.s32.totalorder %s38, 2
      %p142 = por %p140, %p141
      %p143 = scmp.ne.s32.totalorder %s132, %s133
      %p144 = scmp.eq.s32.totalorder %s38, 0
      %p145 = por %p143, %p144
      %p146 = scmp.ne.s32.totalorder %s132, %s133
      %p147 = scmp.eq.s32.totalorder %s39, 2
      %p148 = por %p146, %p147
      %p150 = scmp.ne.s32.totalorder %s133, %s149
      %p151 = scmp.eq.s32.totalorder %s39, 0
      %p152 = por %p150, %p151
      %s153 = ssub.s32 %s33, %s40
      %p154 = scmp.eq.s32.totalorder %s153, 0
      %s156 = sadd.s32 %s155, 1
      %s157 = scalar_select %p154, %s155, %s156
      %p160 = pneg %p154
      %p161 = scmp.eq.s32.totalorder %s33, 2
      %p162 = por %p160, %p161
      %p163 = scmp.ne.s32.totalorder %s155, %s158
      %p164 = scmp.eq.s32.totalorder %s33, 0
      %p165 = por %p163, %p164
      %p166 = scmp.ne.s32.totalorder %s155, %s158
      %p167 = scmp.eq.s32.totalorder %s38, 2
      %p168 = por %p166, %p167
      %p169 = scmp.ne.s32.totalorder %s158, %s159
      %p170 = scmp.eq.s32.totalorder %s38, 0
      %p171 = por %p169, %p170
      %p172 = scmp.ne.s32.totalorder %s158, %s159
      %p173 = scmp.eq.s32.totalorder %s39, 2
      %p174 = por %p172, %p173
      %p176 = scmp.ne.s32.totalorder %s159, %s175
      %p177 = scmp.eq.s32.totalorder %s39, 0
      %p178 = por %p176, %p177
      %p179 = scmp.le.s32.totalorder 1, %s33
      %p180 = scmp.lt.s32.totalorder %s33, 4
      %p181 = pnand %p179, %p180
      %p182 = pneg %p181
      // Predicated region
      $region9: #{tpu_custom_call.1} parent=5 // pred_check
        _
      $region10: #{tpu_custom_call.1} parent=5 // pred_check_branch
        %184 = sbr.rel (%p181) target = $region12
      $region11: #{tpu_custom_call.1} parent=5 // pred_region
        %s185 = ssub.s32 %s33, 1
      $region12: #{tpu_custom_call.1} parent=5 // pred_fallthru
        _
      %p186 = scmp.lt.s32.totalorder %s33, 3
      // Predicated region
      $region13: #{tpu_custom_call.1} parent=5 // pred_check
        %p187 = pneg %p186
      $region14: #{tpu_custom_call.1} parent=5 // pred_check_branch
        %189 = sbr.rel (%p187) target = $region16
      $region15: #{tpu_custom_call.1} parent=5 // pred_region
        // Predicated region
        $region17: #{tpu_custom_call.1} parent=15 // pred_check
          %p190 = pneg %p55
        $region18: #{tpu_custom_call.1} parent=15 // pred_check_branch
          %192 = sbr.rel (%p190) target = $region20
        $region19: #{tpu_custom_call.1} parent=15 // pred_region
          %s193 = sld [smem:[#allocation3 + %s33]]
          %s194 = smul.u32 16, %s193
          %p195 = scmp.lt.s32.totalorder %s194, 31
          %s196 = scalar_select %p195, %s194, 31
          %s197 = smul.addr %s196, 8
          %s198 = scalar_lea.vmem %s3, %s197
          %s199 = sld [smem:[#allocation3 + %s33]]
          %s200 = smul.u32 16, %s199
        $region20: #{tpu_custom_call.1} parent=15 // pred_fallthru
          _
        // Predicated region
        $region21: #{tpu_custom_call.1} parent=15 // pred_check
          %p201 = pneg %p83
        $region22: #{tpu_custom_call.1} parent=15 // pred_check_branch
          %203 = sbr.rel (%p201) target = $region24
        $region23: #{tpu_custom_call.1} parent=15 // pred_region
          %s204 = sand.u32 %s73, 1
          %s205 = scalar_lea.sflag [#allocation7], %s204
          %s206 = sand.u32 %s73, 1
          %s207 = smul.addr %s206, 128
          %s208 = scalar_lea.vmem [#allocation6], %s207
          %s209 = sld [smem:[#allocation4 + %s33]]
          %s210 = smul.u32 16, %s209
          %s212 = ssub.s32 2048, 2048
          %213 = vsyncadd %s205, %s212
          %s214 = smul.addr %s210, 128
          %s215 = scalar_lea.hbm %s4, %s214
          %s216 = sshll.u32 %s208, 4
          %s217 = int_to_ptr.vmem [resolvable:$true] %s216
          %222 = dma.hbm_to_vmem [thread:$0]  %s215, 2048, %s217, %s205, 128, 128, 8
        $region24: #{tpu_custom_call.1} parent=15 // pred_fallthru
          _
        // Predicated region
        $region25: #{tpu_custom_call.1} parent=15 // pred_check
          %p223 = pneg %p111
        $region26: #{tpu_custom_call.1} parent=15 // pred_check_branch
          %225 = sbr.rel (%p223) target = $region28
        $region27: #{tpu_custom_call.1} parent=15 // pred_region
          %s226 = sld [smem:[#allocation3 + %s33]]
          %s227 = smul.u32 16, %s226
          %p228 = scmp.lt.s32.totalorder %s227, 31
          %s229 = scalar_select %p228, %s227, 31
          %s230 = smul.addr %s229, 8
          %s231 = scalar_lea.vmem %s5, %s230
          %s232 = sld [smem:[#allocation3 + %s33]]
          %s233 = smul.u32 16, %s232
        $region28: #{tpu_custom_call.1} parent=15 // pred_fallthru
          _
        // Predicated region
        $region29: #{tpu_custom_call.1} parent=15 // pred_check
          %p234 = pneg %p139
        $region30: #{tpu_custom_call.1} parent=15 // pred_check_branch
          %236 = sbr.rel (%p234) target = $region32
        $region31: #{tpu_custom_call.1} parent=15 // pred_region
          %s237 = sld [smem:[#allocation4 + %s33]]
          %p238 = scmp.lt.s32.totalorder %s237, 1
          %s239 = scalar_select %p238, %s237, 1
          %s240 = scalar_lea.vmem %s6, %s239
          %s241 = sld [smem:[#allocation4 + %s33]]
        $region32: #{tpu_custom_call.1} parent=15 // pred_fallthru
          _
      $region16: #{tpu_custom_call.1} parent=5 // pred_fallthru
        _
      %p242 = scmp.le.s32.totalorder 1, %s33
      %p243 = scmp.lt.s32.totalorder %s33, 4
      %p244 = pnand %p242, %p243
      %p245 = pneg %p244
      // Predicated region
      $region33: #{tpu_custom_call.1} parent=5 // pred_check
        _
      $region34: #{tpu_custom_call.1} parent=5 // pred_check_branch
        %247 = sbr.rel (%p244) target = $region36
      $region35: #{tpu_custom_call.1} parent=5 // pred_region
        %s248 = ssub.s32 %s33, 1
        %s249 = sand.u32 %s76, 1
        %s250 = scalar_lea.sflag [#allocation7], %s249
        %s251 = sand.u32 %s76, 1
        %s252 = smul.addr %s251, 128
        %s253 = scalar_lea.vmem [#allocation6], %s252
        // Predicated region
        $region37: #{tpu_custom_call.1} parent=35 // pred_check
          %p254 = pneg %p89
        $region38: #{tpu_custom_call.1} parent=35 // pred_check_branch
          %256 = sbr.rel (%p254) target = $region40
        $region39: #{tpu_custom_call.1} parent=35 // pred_region
          %257 = dma.done %s250, 2048
        $region40: #{tpu_custom_call.1} parent=35 // pred_fallthru
          _
        %s258 = sld [smem:[#allocation3 + %s38]]
        %s259 = smul.u32 16, %s258
        %p260 = scmp.lt.s32.totalorder %s259, 31
        %s261 = scalar_select %p260, %s259, 31
        %s262 = smul.addr %s261, 8
        %s263 = scalar_lea.vmem %s3, %s262
        %p264 = pneg %p61
        %p265 = pneg %p58
        %s266 = sand.u32 %s76, 1
        %s267 = scalar_lea.sflag [#allocation7], %s266
        %s268 = sand.u32 %s76, 1
        %s269 = smul.addr %s268, 128
        %s270 = scalar_lea.vmem [#allocation6], %s269
        %p271 = pneg %p89
        %p272 = pneg %p86
        %s273 = sld [smem:[#allocation3 + %s38]]
        %s274 = smul.u32 16, %s273
        %p275 = scmp.lt.s32.totalorder %s274, 31
        %s276 = scalar_select %p275, %s274, 31
        %s277 = smul.addr %s276, 8
        %s278 = scalar_lea.vmem %s5, %s277
        %p279 = pneg %p117
        %p280 = pneg %p114
        %s281 = sld [smem:[#allocation4 + %s38]]
        %p282 = scmp.lt.s32.totalorder %s281, 1
        %s283 = scalar_select %p282, %s281, 1
        %s284 = scalar_lea.vmem %s6, %s283
        %p285 = pneg %p145
        %p286 = pneg %p142
        %p287 = pneg %p171
        %p288 = pneg %p168
        %s289 = sand.u32 %s158, 1
        %s290 = scalar_lea.sflag [#allocation8], %s289
        %s291 = sand.u32 %s158, 1
        %s292 = smul.addr %s291, 8
        %s293 = scalar_lea.vmem [#allocation9], %s292
        %s294 = sld [smem:[#allocation3 + %s38]]
        %s295 = smul.u32 16, %s294
        %p296 = scmp.lt.s32.totalorder %s295, 31
        %s297 = scalar_select %p296, %s295, 31
        %s298 = smul.addr %s297, 8
        %s299 = scalar_lea.vmem %s3, %s298
        %s300 = sld [smem:[#allocation3 + %s38]]
        %s301 = smul.u32 16, %s300
        %s302 = sld [smem:[#allocation4 + %s38]]
        %s303 = smul.u32 16, %s302
        %s304 = sld [smem:[#allocation3 + %s38]]
        %s305 = smul.u32 16, %s304
        %p306 = scmp.lt.s32.totalorder %s305, 31
        %s307 = scalar_select %p306, %s305, 31
        %s308 = smul.addr %s307, 8
        %s309 = scalar_lea.vmem %s5, %s308
        %s310 = sld [smem:[#allocation3 + %s38]]
        %s311 = smul.u32 16, %s310
        %s312 = sld [smem:[#allocation4 + %s38]]
        %p313 = scmp.lt.s32.totalorder %s312, 1
        %s314 = scalar_select %p313, %s312, 1
        %s315 = scalar_lea.vmem %s6, %s314
        %s316 = sld [smem:[#allocation4 + %s38]]
        %v317 = vld [vmem:[%s299] sm:$0xff]
        %v318 = vld [vmem:[%s299 + $0x8] sm:$0xff]
        %v319 = vld [vmem:[%s299 + $0x10] sm:$0xff]
        %v320 = vld [vmem:[%s299 + $0x18] sm:$0xff]
        %v321 = vld [vmem:[%s299 + $0x20] sm:$0xff]
        %v322 = vld [vmem:[%s299 + $0x28] sm:$0xff]
        %v323 = vld [vmem:[%s299 + $0x30] sm:$0xff]
        %v324 = vld [vmem:[%s299 + $0x38] sm:$0xff]
        %v325 = vld [vmem:[%s299 + $0x40] sm:$0xff]
        %v326 = vld [vmem:[%s299 + $0x48] sm:$0xff]
        %v327 = vld [vmem:[%s299 + $0x50] sm:$0xff]
        %v328 = vld [vmem:[%s299 + $0x58] sm:$0xff]
        %v329 = vld [vmem:[%s299 + $0x60] sm:$0xff]
        %v330 = vld [vmem:[%s299 + $0x68] sm:$0xff]
        %v331 = vld [vmem:[%s299 + $0x70] sm:$0xff]
        %v332 = vld [vmem:[%s299 + $0x78] sm:$0xff]
        %v333 = vld [vmem:[%s253] sm:$0xff]
        %v334 = vld [vmem:[%s253 + $0x8] sm:$0xff]
        %v335 = vld [vmem:[%s253 + $0x10] sm:$0xff]
        %v336 = vld [vmem:[%s253 + $0x18] sm:$0xff]
        %v337 = vld [vmem:[%s253 + $0x20] sm:$0xff]
        %v338 = vld [vmem:[%s253 + $0x28] sm:$0xff]
        %v339 = vld [vmem:[%s253 + $0x30] sm:$0xff]
        %v340 = vld [vmem:[%s253 + $0x38] sm:$0xff]
        %v341 = vld [vmem:[%s253 + $0x40] sm:$0xff]
        %v342 = vld [vmem:[%s253 + $0x48] sm:$0xff]
        %v343 = vld [vmem:[%s253 + $0x50] sm:$0xff]
        %v344 = vld [vmem:[%s253 + $0x58] sm:$0xff]
        %v345 = vld [vmem:[%s253 + $0x60] sm:$0xff]
        %v346 = vld [vmem:[%s253 + $0x68] sm:$0xff]
        %v347 = vld [vmem:[%s253 + $0x70] sm:$0xff]
        %v348 = vld [vmem:[%s253 + $0x78] sm:$0xff]
        %349 = vmatprep.subr.mxu0 0.0
        %350 = vmatpush1.xpose.msra.mxu0 %v333
        %351 = vmatprep.subr.mxu0 0.0
        %352 = vmatpush1.xpose.msra.mxu0 %v334
        %353 = vmatprep.subr.mxu0 0.0
        %354 = vmatpush1.xpose.msra.mxu0 %v335
        %355 = vmatprep.subr.mxu0 0.0
        %356 = vmatpush1.xpose.msra.mxu0 %v336
        %357 = vmatprep.subr.mxu0 0.0
        %358 = vmatpush1.xpose.msra.mxu0 %v337
        %359 = vmatprep.subr.mxu0 0.0
        %360 = vmatpush1.xpose.msra.mxu0 %v338
        %361 = vmatprep.subr.mxu0 0.0
        %362 = vmatpush1.xpose.msra.mxu0 %v339
        %363 = vmatprep.subr.mxu0 0.0
        %364 = vmatpush1.xpose.msra.mxu0 %v340
        %365 = vmatprep.subr.mxu0 0.0
        %366 = vmatpush1.xpose.msra.mxu0 %v341
        %367 = vmatprep.subr.mxu0 0.0
        %368 = vmatpush1.xpose.msra.mxu0 %v342
        %369 = vmatprep.subr.mxu0 0.0
        %370 = vmatpush1.xpose.msra.mxu0 %v343
        %371 = vmatprep.subr.mxu0 0.0
        %372 = vmatpush1.xpose.msra.mxu0 %v344
        %373 = vmatprep.subr.mxu0 0.0
        %374 = vmatpush1.xpose.msra.mxu0 %v345
        %375 = vmatprep.subr.mxu0 0.0
        %376 = vmatpush1.xpose.msra.mxu0 %v346
        %377 = vmatprep.subr.mxu0 0.0
        %378 = vmatpush1.xpose.msra.mxu0 %v347
        %379 = vmatprep.subr.mxu0 0.0
        %380 = vmatpush1.xpose.msra.mxu0 %v348
        %381 = vmatprep.subr.mxu0 0.0
        %382 = vmatpush1.xpose.msra.mxu0 0.0
        %383 = vmatprep.subr.mxu0 0.0
        %384 = vmatpush1.xpose.msra.mxu0 0.0
        %385 = vmatprep.subr.mxu0 0.0
        %386 = vmatpush1.xpose.msra.mxu0 0.0
        %387 = vmatprep.subr.mxu0 0.0
        %388 = vmatpush1.xpose.msra.mxu0 0.0
        %389 = vmatprep.subr.mxu0 0.0
        %390 = vmatpush1.xpose.msra.mxu0 0.0
        %391 = vmatprep.subr.mxu0 0.0
        %392 = vmatpush1.xpose.msra.mxu0 0.0
        %393 = vmatprep.subr.mxu0 0.0
        %394 = vmatpush1.xpose.msra.mxu0 0.0
        %395 = vmatprep.subr.mxu0 0.0
        %396 = vmatpush1.xpose.msra.mxu0 0.0
        %397 = vmatprep.subr.mxu0 0.0
        %398 = vmatpush1.xpose.msra.mxu0 0.0
        %399 = vmatprep.subr.mxu0 0.0
        %400 = vmatpush1.xpose.msra.mxu0 0.0
        %401 = vmatprep.subr.mxu0 0.0
        %402 = vmatpush1.xpose.msra.mxu0 0.0
        %403 = vmatprep.subr.mxu0 0.0
        %404 = vmatpush1.xpose.msra.mxu0 0.0
        %405 = vmatprep.subr.mxu0 0.0
        %406 = vmatpush1.xpose.msra.mxu0 0.0
        %407 = vmatprep.subr.mxu0 0.0
        %408 = vmatpush1.xpose.msra.mxu0 0.0
        %409 = vmatprep.subr.mxu0 0.0
        %410 = vmatpush1.xpose.msra.mxu0 0.0
        %411 = vmatprep.subr.mxu0 0.0
        %412 = vmatpush1.xpose.msra.mxu0 0.0
        %413 = vmatprep.mubr.f32.mxu0 0.0
        %414 = vmatmul.mubr.f32.gmra.mrb[0].mxu0 %v317
        %v415 = vpop.f32.mrb[0].mxu0
        %v416 = vadd.f32 0.0, %v415
        %v417 = vpop.f32.mrb[0].mxu0
        %418 = vmatprep.mubr.f32.mxu0 0.0
        %419 = vmatmul.mubr.f32.gmra.mrb[0].mxu0 %v318
        %v420 = vpop.f32.mrb[0].mxu0
        %v421 = vadd.f32 0.0, %v420
        %v422 = vpop.f32.mrb[0].mxu0
        %423 = vmatprep.mubr.f32.mxu0 0.0
        %424 = vmatmul.mubr.f32.gmra.mrb[0].mxu0 %v319
        %v425 = vpop.f32.mrb[0].mxu0
        %v426 = vadd.f32 0.0, %v425
        %v427 = vpop.f32.mrb[0].mxu0
        %428 = vmatprep.mubr.f32.mxu0 0.0
        %429 = vmatmul.mubr.f32.gmra.mrb[0].mxu0 %v320
        %v430 = vpop.f32.mrb[0].mxu0
        %v431 = vadd.f32 0.0, %v430
        %v432 = vpop.f32.mrb[0].mxu0
        %433 = vmatprep.mubr.f32.mxu0 0.0
        %434 = vmatmul.mubr.f32.gmra.mrb[0].mxu0 %v321
        %v435 = vpop.f32.mrb[0].mxu0
        %v436 = vadd.f32 0.0, %v435
        %v437 = vpop.f32.mrb[0].mxu0
        %438 = vmatprep.mubr.f32.mxu0 0.0
        %439 = vmatmul.mubr.f32.gmra.mrb[0].mxu0 %v322
        %v440 = vpop.f32.mrb[0].mxu0
        %v441 = vadd.f32 0.0, %v440
        %v442 = vpop.f32.mrb[0].mxu0
        %443 = vmatprep.mubr.f32.mxu0 0.0
        %444 = vmatmul.mubr.f32.gmra.mrb[0].mxu0 %v323
        %v445 = vpop.f32.mrb[0].mxu0
        %v446 = vadd.f32 0.0, %v445
        %v447 = vpop.f32.mrb[0].mxu0
        %448 = vmatprep.mubr.f32.mxu0 0.0
        %449 = vmatmul.mubr.f32.gmra.mrb[0].mxu0 %v324
        %v450 = vpop.f32.mrb[0].mxu0
        %v451 = vadd.f32 0.0, %v450
        %v452 = vpop.f32.mrb[0].mxu0
        %453 = vmatprep.mubr.f32.mxu0 0.0
        %454 = vmatmul.mubr.f32.gmra.mrb[0].mxu0 %v325
        %v455 = vpop.f32.mrb[0].mxu0
        %v456 = vadd.f32 0.0, %v455
        %v457 = vpop.f32.mrb[0].mxu0
        %458 = vmatprep.mubr.f32.mxu0 0.0
        %459 = vmatmul.mubr.f32.gmra.mrb[0].mxu0 %v326
        %v460 = vpop.f32.mrb[0].mxu0
        %v461 = vadd.f32 0.0, %v460
        %v462 = vpop.f32.mrb[0].mxu0
        %463 = vmatprep.mubr.f32.mxu0 0.0
        %464 = vmatmul.mubr.f32.gmra.mrb[0].mxu0 %v327
        %v465 = vpop.f32.mrb[0].mxu0
        %v466 = vadd.f32 0.0, %v465
        %v467 = vpop.f32.mrb[0].mxu0
        %468 = vmatprep.mubr.f32.mxu0 0.0
        %469 = vmatmul.mubr.f32.gmra.mrb[0].mxu0 %v328
        %v470 = vpop.f32.mrb[0].mxu0
        %v471 = vadd.f32 0.0, %v470
        %v472 = vpop.f32.mrb[0].mxu0
        %473 = vmatprep.mubr.f32.mxu0 0.0
        %474 = vmatmul.mubr.f32.gmra.mrb[0].mxu0 %v329
        %v475 = vpop.f32.mrb[0].mxu0
        %v476 = vadd.f32 0.0, %v475
        %v477 = vpop.f32.mrb[0].mxu0
        %478 = vmatprep.mubr.f32.mxu0 0.0
        %479 = vmatmul.mubr.f32.gmra.mrb[0].mxu0 %v330
        %v480 = vpop.f32.mrb[0].mxu0
        %v481 = vadd.f32 0.0, %v480
        %v482 = vpop.f32.mrb[0].mxu0
        %483 = vmatprep.mubr.f32.mxu0 0.0
        %484 = vmatmul.mubr.f32.gmra.mrb[0].mxu0 %v331
        %v485 = vpop.f32.mrb[0].mxu0
        %v486 = vadd.f32 0.0, %v485
        %v487 = vpop.f32.mrb[0].mxu0
        %488 = vmatprep.mubr.f32.mxu0 0.0
        %489 = vmatmul.mubr.f32.gmra.mrb[0].mxu0 %v332
        %v490 = vpop.f32.mrb[0].mxu0
        %v491 = vadd.f32 0.0, %v490
        %v492 = vpop.f32.mrb[0].mxu0
        %493 = vdwg.mxu0
        %v494 = vld [vmem:[%s309] sm:$0xff]
        %v495 = vld [vmem:[%s309 + $0x8] sm:$0xff]
        %v496 = vld [vmem:[%s309 + $0x10] sm:$0xff]
        %v497 = vld [vmem:[%s309 + $0x18] sm:$0xff]
        %v498 = vld [vmem:[%s309 + $0x20] sm:$0xff]
        %v499 = vld [vmem:[%s309 + $0x28] sm:$0xff]
        %v500 = vld [vmem:[%s309 + $0x30] sm:$0xff]
        %v501 = vld [vmem:[%s309 + $0x38] sm:$0xff]
        %v502 = vld [vmem:[%s309 + $0x40] sm:$0xff]
        %v503 = vld [vmem:[%s309 + $0x48] sm:$0xff]
        %v504 = vld [vmem:[%s309 + $0x50] sm:$0xff]
        %v505 = vld [vmem:[%s309 + $0x58] sm:$0xff]
        %v506 = vld [vmem:[%s309 + $0x60] sm:$0xff]
        %v507 = vld [vmem:[%s309 + $0x68] sm:$0xff]
        %v508 = vld [vmem:[%s309 + $0x70] sm:$0xff]
        %v509 = vld [vmem:[%s309 + $0x78] sm:$0xff]
        %v510 = vld [vmem:[%s315] sm:$0x1]
        %512 = vset.pattern.permute.xlu0 0
        %513 = vperm.xlu0 %512, %v494
        %v514 = vpop.permute.xlu0 %513
        %517 = vset.pattern.permute.xlu0 0
        %518 = vperm.xlu0 %517, %v495
        %v519 = vpop.permute.xlu0 %518
        %522 = vset.pattern.permute.xlu0 0
        %523 = vperm.xlu0 %522, %v496
        %v524 = vpop.permute.xlu0 %523
        %527 = vset.pattern.permute.xlu0 0
        %528 = vperm.xlu0 %527, %v497
        %v529 = vpop.permute.xlu0 %528
        %532 = vset.pattern.permute.xlu0 0
        %533 = vperm.xlu0 %532, %v498
        %v534 = vpop.permute.xlu0 %533
        %537 = vset.pattern.permute.xlu0 0
        %538 = vperm.xlu0 %537, %v499
        %v539 = vpop.permute.xlu0 %538
        %542 = vset.pattern.permute.xlu0 0
        %543 = vperm.xlu0 %542, %v500
        %v544 = vpop.permute.xlu0 %543
        %547 = vset.pattern.permute.xlu0 0
        %548 = vperm.xlu0 %547, %v501
        %v549 = vpop.permute.xlu0 %548
        %552 = vset.pattern.permute.xlu0 0
        %553 = vperm.xlu0 %552, %v502
        %v554 = vpop.permute.xlu0 %553
        %557 = vset.pattern.permute.xlu0 0
        %558 = vperm.xlu0 %557, %v503
        %v559 = vpop.permute.xlu0 %558
        %562 = vset.pattern.permute.xlu0 0
        %563 = vperm.xlu0 %562, %v504
        %v564 = vpop.permute.xlu0 %563
        %567 = vset.pattern.permute.xlu0 0
        %568 = vperm.xlu0 %567, %v505
        %v569 = vpop.permute.xlu0 %568
        %572 = vset.pattern.permute.xlu0 0
        %573 = vperm.xlu0 %572, %v506
        %v574 = vpop.permute.xlu0 %573
        %577 = vset.pattern.permute.xlu0 0
        %578 = vperm.xlu0 %577, %v507
        %v579 = vpop.permute.xlu0 %578
        %582 = vset.pattern.permute.xlu0 0
        %583 = vperm.xlu0 %582, %v508
        %v584 = vpop.permute.xlu0 %583
        %587 = vset.pattern.permute.xlu0 0
        %588 = vperm.xlu0 %587, %v509
        %v589 = vpop.permute.xlu0 %588
        %v592 = vlaneseq
        %v593 = vshrl.u32 %v592, 7
        %v594 = vsub.s32 0, %v593
        %v595 = vrot.slane %v510, %v594
        %v597 = vadd.f32 %v514, %v595
        %v598 = vadd.f32 %v519, %v595
        %v599 = vadd.f32 %v524, %v595
        %v600 = vadd.f32 %v529, %v595
        %v601 = vadd.f32 %v534, %v595
        %v602 = vadd.f32 %v539, %v595
        %v603 = vadd.f32 %v544, %v595
        %v604 = vadd.f32 %v549, %v595
        %v605 = vadd.f32 %v554, %v595
        %v606 = vadd.f32 %v559, %v595
        %v607 = vadd.f32 %v564, %v595
        %v608 = vadd.f32 %v569, %v595
        %v609 = vadd.f32 %v574, %v595
        %v610 = vadd.f32 %v579, %v595
        %v611 = vadd.f32 %v584, %v595
        %v612 = vadd.f32 %v589, %v595
        %v613 = vmul.f32 %v416, 2.0
        %v614 = vmul.f32 %v421, 2.0
        %v615 = vmul.f32 %v426, 2.0
        %v616 = vmul.f32 %v431, 2.0
        %v617 = vmul.f32 %v436, 2.0
        %v618 = vmul.f32 %v441, 2.0
        %v619 = vmul.f32 %v446, 2.0
        %v620 = vmul.f32 %v451, 2.0
        %v621 = vmul.f32 %v456, 2.0
        %v622 = vmul.f32 %v461, 2.0
        %v623 = vmul.f32 %v466, 2.0
        %v624 = vmul.f32 %v471, 2.0
        %v625 = vmul.f32 %v476, 2.0
        %v626 = vmul.f32 %v481, 2.0
        %v627 = vmul.f32 %v486, 2.0
        %v628 = vmul.f32 %v491, 2.0
        %v629 = vsub.f32 %v597, %v613
        %v630 = vsub.f32 %v598, %v614
        %v631 = vsub.f32 %v599, %v615
        %v632 = vsub.f32 %v600, %v616
        %v633 = vsub.f32 %v601, %v617
        %v634 = vsub.f32 %v602, %v618
        %v635 = vsub.f32 %v603, %v619
        %v636 = vsub.f32 %v604, %v620
        %v637 = vsub.f32 %v605, %v621
        %v638 = vsub.f32 %v606, %v622
        %v639 = vsub.f32 %v607, %v623
        %v640 = vsub.f32 %v608, %v624
        %v641 = vsub.f32 %v609, %v625
        %v642 = vsub.f32 %v610, %v626
        %v643 = vsub.f32 %v611, %v627
        %v644 = vsub.f32 %v612, %v628
        %v645 = vmax.f32 %v629, 0.0
        %v646 = vmax.f32 %v630, 0.0
        %v647 = vmax.f32 %v631, 0.0
        %v648 = vmax.f32 %v632, 0.0
        %v649 = vmax.f32 %v633, 0.0
        %v650 = vmax.f32 %v634, 0.0
        %v651 = vmax.f32 %v635, 0.0
        %v652 = vmax.f32 %v636, 0.0
        %v653 = vmax.f32 %v637, 0.0
        %v654 = vmax.f32 %v638, 0.0
        %v655 = vmax.f32 %v639, 0.0
        %v656 = vmax.f32 %v640, 0.0
        %v657 = vmax.f32 %v641, 0.0
        %v658 = vmax.f32 %v642, 0.0
        %v659 = vmax.f32 %v643, 0.0
        %v660 = vmax.f32 %v644, 0.0
        %v661 = vmul.f32 %v645, -0.0625
        %v662 = vmul.f32 %v646, -0.0625
        %v663 = vmul.f32 %v647, -0.0625
        %v664 = vmul.f32 %v648, -0.0625
        %v665 = vmul.f32 %v649, -0.0625
        %v666 = vmul.f32 %v650, -0.0625
        %v667 = vmul.f32 %v651, -0.0625
        %v668 = vmul.f32 %v652, -0.0625
        %v669 = vmul.f32 %v653, -0.0625
        %v670 = vmul.f32 %v654, -0.0625
        %v671 = vmul.f32 %v655, -0.0625
        %v672 = vmul.f32 %v656, -0.0625
        %v673 = vmul.f32 %v657, -0.0625
        %v674 = vmul.f32 %v658, -0.0625
        %v675 = vmul.f32 %v659, -0.0625
        %v676 = vmul.f32 %v660, -0.0625
        %v677 = vmul.f32 %v661, 1.442695
        %v678 = vpow.pop %v677
        %v679 = vmul.f32 %v662, 1.442695
        %v680 = vpow.pop %v679
        %v681 = vmul.f32 %v663, 1.442695
        %v682 = vpow.pop %v681
        %v683 = vmul.f32 %v664, 1.442695
        %v684 = vpow.pop %v683
        %v685 = vmul.f32 %v665, 1.442695
        %v686 = vpow.pop %v685
        %v687 = vmul.f32 %v666, 1.442695
        %v688 = vpow.pop %v687
        %v689 = vmul.f32 %v667, 1.442695
        %v690 = vpow.pop %v689
        %v691 = vmul.f32 %v668, 1.442695
        %v692 = vpow.pop %v691
        %v693 = vmul.f32 %v669, 1.442695
        %v694 = vpow.pop %v693
        %v695 = vmul.f32 %v670, 1.442695
        %v696 = vpow.pop %v695
        %v697 = vmul.f32 %v671, 1.442695
        %v698 = vpow.pop %v697
        %v699 = vmul.f32 %v672, 1.442695
        %v700 = vpow.pop %v699
        %v701 = vmul.f32 %v673, 1.442695
        %v702 = vpow.pop %v701
        %v703 = vmul.f32 %v674, 1.442695
        %v704 = vpow.pop %v703
        %v705 = vmul.f32 %v675, 1.442695
        %v706 = vpow.pop %v705
        %v707 = vmul.f32 %v676, 1.442695
        %v708 = vpow.pop %v707
        %v709 = vmul.f32 %v678, %v678
        %v710 = vmul.f32 %v680, %v680
        %v711 = vmul.f32 %v682, %v682
        %v712 = vmul.f32 %v684, %v684
        %v713 = vmul.f32 %v686, %v686
        %v714 = vmul.f32 %v688, %v688
        %v715 = vmul.f32 %v690, %v690
        %v716 = vmul.f32 %v692, %v692
        %v717 = vmul.f32 %v694, %v694
        %v718 = vmul.f32 %v696, %v696
        %v719 = vmul.f32 %v698, %v698
        %v720 = vmul.f32 %v700, %v700
        %v721 = vmul.f32 %v702, %v702
        %v722 = vmul.f32 %v704, %v704
        %v723 = vmul.f32 %v706, %v706
        %v724 = vmul.f32 %v708, %v708
        %v725 = vadd.f32 %v678, %v709
        %v726 = vadd.f32 %v680, %v710
        %v727 = vadd.f32 %v682, %v711
        %v728 = vadd.f32 %v684, %v712
        %v729 = vadd.f32 %v686, %v713
        %v730 = vadd.f32 %v688, %v714
        %v731 = vadd.f32 %v690, %v715
        %v732 = vadd.f32 %v692, %v716
        %v733 = vadd.f32 %v694, %v717
        %v734 = vadd.f32 %v696, %v718
        %v735 = vadd.f32 %v698, %v719
        %v736 = vadd.f32 %v700, %v720
        %v737 = vadd.f32 %v702, %v721
        %v738 = vadd.f32 %v704, %v722
        %v739 = vadd.f32 %v706, %v723
        %v740 = vadd.f32 %v708, %v724
        %v741 = vmul.f32 %v709, %v709
        %v742 = vmul.f32 %v710, %v710
        %v743 = vmul.f32 %v711, %v711
        %v744 = vmul.f32 %v712, %v712
        %v745 = vmul.f32 %v713, %v713
        %v746 = vmul.f32 %v714, %v714
        %v747 = vmul.f32 %v715, %v715
        %v748 = vmul.f32 %v716, %v716
        %v749 = vmul.f32 %v717, %v717
        %v750 = vmul.f32 %v718, %v718
        %v751 = vmul.f32 %v719, %v719
        %v752 = vmul.f32 %v720, %v720
        %v753 = vmul.f32 %v721, %v721
        %v754 = vmul.f32 %v722, %v722
        %v755 = vmul.f32 %v723, %v723
        %v756 = vmul.f32 %v724, %v724
        %v757 = vadd.f32 %v725, %v741
        %v758 = vadd.f32 %v726, %v742
        %v759 = vadd.f32 %v727, %v743
        %v760 = vadd.f32 %v728, %v744
        %v761 = vadd.f32 %v729, %v745
        %v762 = vadd.f32 %v730, %v746
        %v763 = vadd.f32 %v731, %v747
        %v764 = vadd.f32 %v732, %v748
        %v765 = vadd.f32 %v733, %v749
        %v766 = vadd.f32 %v734, %v750
        %v767 = vadd.f32 %v735, %v751
        %v768 = vadd.f32 %v736, %v752
        %v769 = vadd.f32 %v737, %v753
        %v770 = vadd.f32 %v738, %v754
        %v771 = vadd.f32 %v739, %v755
        %v772 = vadd.f32 %v740, %v756
        %v773 = vmul.f32 %v741, %v741
        %v774 = vmul.f32 %v742, %v742
        %v775 = vmul.f32 %v743, %v743
        %v776 = vmul.f32 %v744, %v744
        %v777 = vmul.f32 %v745, %v745
        %v778 = vmul.f32 %v746, %v746
        %v779 = vmul.f32 %v747, %v747
        %v780 = vmul.f32 %v748, %v748
        %v781 = vmul.f32 %v749, %v749
        %v782 = vmul.f32 %v750, %v750
        %v783 = vmul.f32 %v751, %v751
        %v784 = vmul.f32 %v752, %v752
        %v785 = vmul.f32 %v753, %v753
        %v786 = vmul.f32 %v754, %v754
        %v787 = vmul.f32 %v755, %v755
        %v788 = vmul.f32 %v756, %v756
        %v789 = vadd.f32 %v757, %v773
        %v790 = vadd.f32 %v758, %v774
        %v791 = vadd.f32 %v759, %v775
        %v792 = vadd.f32 %v760, %v776
        %v793 = vadd.f32 %v761, %v777
        %v794 = vadd.f32 %v762, %v778
        %v795 = vadd.f32 %v763, %v779
        %v796 = vadd.f32 %v764, %v780
        %v797 = vadd.f32 %v765, %v781
        %v798 = vadd.f32 %v766, %v782
        %v799 = vadd.f32 %v767, %v783
        %v800 = vadd.f32 %v768, %v784
        %v801 = vadd.f32 %v769, %v785
        %v802 = vadd.f32 %v770, %v786
        %v803 = vadd.f32 %v771, %v787
        %v804 = vadd.f32 %v772, %v788
        %v805 = vmul.f32 %v773, %v773
        %v806 = vmul.f32 %v774, %v774
        %v807 = vmul.f32 %v775, %v775
        %v808 = vmul.f32 %v776, %v776
        %v809 = vmul.f32 %v777, %v777
        %v810 = vmul.f32 %v778, %v778
        %v811 = vmul.f32 %v779, %v779
        %v812 = vmul.f32 %v780, %v780
        %v813 = vmul.f32 %v781, %v781
        %v814 = vmul.f32 %v782, %v782
        %v815 = vmul.f32 %v783, %v783
        %v816 = vmul.f32 %v784, %v784
        %v817 = vmul.f32 %v785, %v785
        %v818 = vmul.f32 %v786, %v786
        %v819 = vmul.f32 %v787, %v787
        %v820 = vmul.f32 %v788, %v788
        %v821 = vadd.f32 %v789, %v805
        %v822 = vadd.f32 %v790, %v806
        %v823 = vadd.f32 %v791, %v807
        %v824 = vadd.f32 %v792, %v808
        %v825 = vadd.f32 %v793, %v809
        %v826 = vadd.f32 %v794, %v810
        %v827 = vadd.f32 %v795, %v811
        %v828 = vadd.f32 %v796, %v812
        %v829 = vadd.f32 %v797, %v813
        %v830 = vadd.f32 %v798, %v814
        %v831 = vadd.f32 %v799, %v815
        %v832 = vadd.f32 %v800, %v816
        %v833 = vadd.f32 %v801, %v817
        %v834 = vadd.f32 %v802, %v818
        %v835 = vadd.f32 %v803, %v819
        %v836 = vadd.f32 %v804, %v820
        %s837 = sld [smem:[#allocation5 + %s38]]
        %s838 = scvt.s32.f32 %s837
        %v839 = vadd.f32 %v821, %v822
        %v840 = vadd.f32 %v839, %v823
        %v841 = vadd.f32 %v840, %v824
        %v842 = vadd.f32 %v841, %v825
        %v843 = vadd.f32 %v842, %v826
        %v844 = vadd.f32 %v843, %v827
        %v845 = vadd.f32 %v844, %v828
        %v846 = vadd.f32 %v845, %v829
        %v847 = vadd.f32 %v846, %v830
        %v848 = vadd.f32 %v847, %v831
        %v849 = vadd.f32 %v848, %v832
        %v850 = vadd.f32 %v849, %v833
        %v851 = vadd.f32 %v850, %v834
        %v852 = vadd.f32 %v851, %v835
        %v853 = vadd.f32 %v852, %v836
        %854 = vadd.xlane.f32.xlu0 %v853
        %v855 = vpop.xlane.xlu0 %854
        %v856 = vrot.slane %v855, 4
        %v857 = vadd.f32 %v855, %v856
        %v858 = vrot.slane %v857, 2
        %v859 = vadd.f32 %v857, %v858
        %v860 = vrot.slane %v859, 1
        %v861 = vadd.f32 %v859, %v860
        %s862 = vtos %v861
        %s863 = smul.f32 %s838, %s862
        %v864 = vlaneseq
        %v865 = vshrl.u32 %v864, 7
        %v866 = vlaneseq
        %v867 = vand.u32 %v866, 127
        %vm868 = vcmp.eq.s32.totalorder %v865, 0
        %vm869 = vcmp.eq.s32.totalorder %v867, 0
        %vm870 = vmand %vm868, %vm869
        %v871 = vstv %s863
        %v872 = vsel %vm870, %v871, 0.0
        %873 = vst [vmem:[%s293] sm:$0xff] %v872
        %s874 = sand.u32 %s158, 1
        %s875 = scalar_lea.sflag [#allocation8], %s874
        %s876 = sand.u32 %s158, 1
        %s877 = smul.addr %s876, 8
        %s878 = scalar_lea.vmem [#allocation9], %s877
        // Predicated region
        $region41: #{tpu_custom_call.1} parent=35 // pred_check
          %p879 = pneg %p168
        $region42: #{tpu_custom_call.1} parent=35 // pred_check_branch
          %881 = sbr.rel (%p879) target = $region44
        $region43: #{tpu_custom_call.1} parent=35 // pred_region
          %s883 = ssub.s32 128, 128
          %884 = vsyncadd %s875, %s883
          %s885 = smul.addr %s38, 128
          %s886 = scalar_lea.hbm %s7, %s885
          %s888 = sshll.u32 %s878, 4
          %s889 = int_to_ptr.vmem [resolvable:$true] %s888
          %891 = dma.vmem_to_hbm [thread:$0]  %s889, 128, %s886, %s875
        $region44: #{tpu_custom_call.1} parent=35 // pred_fallthru
          _
      $region36: #{tpu_custom_call.1} parent=5 // pred_fallthru
        _
      %p892 = scmp.le.s32.totalorder 2, %s33
      // Predicated region
      $region45: #{tpu_custom_call.1} parent=5 // pred_check
        %p893 = pneg %p892
      $region46: #{tpu_custom_call.1} parent=5 // pred_check_branch
        %895 = sbr.rel (%p893) target = $region48
      $region47: #{tpu_custom_call.1} parent=5 // pred_region
        %s896 = ssub.s32 %s33, 2
        // Predicated region
        $region49: #{tpu_custom_call.1} parent=47 // pred_check
          %p897 = pneg %p174
        $region50: #{tpu_custom_call.1} parent=47 // pred_check_branch
          %899 = sbr.rel (%p897) target = $region52
        $region51: #{tpu_custom_call.1} parent=47 // pred_region
          %s900 = sand.u32 %s159, 1
          %s901 = scalar_lea.sflag [#allocation8], %s900
          %s902 = sand.u32 %s159, 1
          %s903 = smul.addr %s902, 8
          %s904 = scalar_lea.vmem [#allocation9], %s903
          %905 = dma.done %s901, 128
        $region52: #{tpu_custom_call.1} parent=47 // pred_fallthru
          _
      $region48: #{tpu_custom_call.1} parent=5 // pred_fallthru
        _
    $region6: #{tpu_custom_call.1} parent=1 // loop_footer
      %s37 = sadd.s32 1, %s33
    $region7: #{tpu_custom_call.1} parent=1 // loop_footer_branch
      %32 = sbr.rel target = $region3
    $region8: #{tpu_custom_call.1} parent=1 // loop_exit
      _
    %906 = vsyncpa [#allocation7], 1
    %s907 = scalar_lea.sflag [#allocation7], 1
    %908 = vsyncpa %s907, 1
    %909 = vsyncpa [#allocation8], 1
    %s910 = scalar_lea.sflag [#allocation8], 1
    %911 = vsyncpa %s910, 1

</llo_original>
